<compile_context>
chip_gen: v7x
topology: tpu7x:2x2x1
jax: 0.10.0
libtpu: 0.0.40
codegen_flags: <defaults>
</compile_context>

<pallas_src>
import functools

import jax
import jax.numpy as jnp
from jax.experimental import pallas as pl
from jax.experimental.pallas import tpu as pltpu


def _fourier_pe_kernel(coords_ref, freqs_ref, o_ref, *, num_coord_dims):
    # coords_ref: (1, TN, C)  coordinates tile
    # freqs_ref : (1, F)      frequency bands (VMEM-resident across grid)
    # o_ref     : (1, TN, C*2*F)
    coords = coords_ref[0]            # (TN, C)
    freqs = freqs_ref[...]            # (1, F)

    pieces = []
    for c in range(num_coord_dims):   # static small loop (C == 2 for 2-D coords)
        phase = coords[:, c:c + 1] * freqs          # (TN, 1)*(1, F) -> (TN, F)
        # PyTorch layout: per coordinate dim -> [sin(f0..fF-1), cos(f0..fF-1)]
        pieces.append(jnp.sin(phase))
        pieces.append(jnp.cos(phase))

    out = jnp.concatenate(pieces, axis=-1)          # (TN, C*2*F)
    o_ref[0] = out.astype(o_ref.dtype)              # single lane-dense store


def fourier_positional_embedding(coords, embed_dim=256, *, tile_n=512):
    """coords: (B, N, C) float32; returns (B, N, C * 2 * (embed_dim // 4))."""
    B, N, C = coords.shape
    F = embed_dim // 4
    E = C * 2 * F                                     # == embed_dim when C == 2

    # torch.linspace(1.0, 64.0, steps=embed_dim // 4)
    freqs = jnp.linspace(1.0, 64.0, F, dtype=jnp.float32).reshape(1, F)

    # Tile N so the pipeline has multiple steps; keep second-minor dim legal
    # ((8,128) rule: TN is a multiple of 8, or equals the full N).
    TN = N if N <= tile_n else tile_n
    grid = (B, pl.cdiv(N, TN))

    kernel = functools.partial(_fourier_pe_kernel, num_coord_dims=C)

    return pl.pallas_call(
        kernel,
        out_shape=jax.ShapeDtypeStruct((B, N, E), coords.dtype),
        grid_spec=pltpu.PrefetchScalarGridSpec(
            num_scalar_prefetch=0,
            grid=grid,
            in_specs=[
                pl.BlockSpec((1, TN, C), lambda b, n: (b, n, 0)),
                pl.BlockSpec((1, F), lambda b, n: (0, 0)),   # stays resident
            ],
            out_specs=pl.BlockSpec((1, TN, E), lambda b, n: (b, n, 0)),
        ),
        compiler_params=pltpu.CompilerParams(
            dimension_semantics=("parallel", "parallel"),
        ),
    )(coords, freqs)


if __name__ == "__main__":
    # Small shapes consistent with the module: batch=2, num_coords=8,
    # 2-D coordinates, embed_dim=32 -> freq_bands has 8 entries, output (2, 8, 32).
    B, N, C = 2, 8, 2
    embed_dim = 32

    key = jax.random.PRNGKey(0)
    coords = jax.random.uniform(key, (B, N, C), dtype=jnp.float32)

    out = fourier_positional_embedding(coords, embed_dim=embed_dim)
    out = jax.block_until_ready(out)
    assert out.shape == (B, N, embed_dim), out.shape

    # Pure-JAX reference mirroring the PyTorch forward.
    F = embed_dim // 4
    freq_bands = jnp.linspace(1.0, 64.0, F, dtype=jnp.float32)
    ref = coords[..., None] * freq_bands                              # (B, N, C, F)
    ref = jnp.concatenate([jnp.sin(ref), jnp.cos(ref)], axis=-1)      # (B, N, C, 2F)
    ref = ref.reshape(B, N, -1)
    assert jnp.allclose(out, ref, atol=1e-5), float(jnp.max(jnp.abs(out - ref)))

    print("KERNEL_OK")
</pallas_src>

<mosaic_0001>
module attributes {stable_mosaic.version = 11 : i64} {
  func.func @_fourier_pe_kernel(%arg0: i32, %arg1: i32, %arg2: memref<1x8x2xf32, #tpu.memory_space<vmem>>, %arg3: memref<1x8xf32, #tpu.memory_space<vmem>>, %arg4: memref<1x8x32xf32, #tpu.memory_space<vmem>>) attributes {dimension_semantics = [#tpu.dimension_semantics<parallel>, #tpu.dimension_semantics<parallel>], iteration_bounds = array<i64: 2, 1>, scalar_prefetch = 0 : i64, scratch_operands = 0 : i64, tpu.core_type = #tpu.core_type<tc>, window_params = [{transform_indices = @transform_0, window_bounds = array<i64: 1, 8, 2>}, {pipeline_mode = #tpu.pipeline_mode<synchronous>, transform_indices = @transform_1, window_bounds = array<i64: 1, 8>}, {transform_indices = @transform_2, window_bounds = array<i64: 1, 8, 32>}]} {
    %c0 = arith.constant 0 : index
    %c0_0 = arith.constant 0 : index
    %c0_1 = arith.constant 0 : index
    %0 = vector.load %arg2[%c0, %c0_0, %c0_1] : memref<1x8x2xf32, #tpu.memory_space<vmem>>, vector<1x8x2xf32>
    %1 = vector.shape_cast %0 : vector<1x8x2xf32> to vector<8x2xf32>
    %c0_2 = arith.constant 0 : index
    %c0_3 = arith.constant 0 : index
    %2 = vector.load %arg3[%c0_2, %c0_3] : memref<1x8xf32, #tpu.memory_space<vmem>>, vector<1x8xf32>
    %3 = vector.extract_strided_slice %1 {offsets = [0, 0], sizes = [8, 1], strides = [1, 1]} : vector<8x2xf32> to vector<8x1xf32>
    %4 = vector.broadcast %3 : vector<8x1xf32> to vector<8x8xf32>
    %5 = vector.broadcast %2 : vector<1x8xf32> to vector<8x8xf32>
    %6 = arith.mulf %4, %5 : vector<8x8xf32>
    %7 = math.sin %6 : vector<8x8xf32>
    %8 = math.cos %6 : vector<8x8xf32>
    %9 = vector.extract_strided_slice %1 {offsets = [0, 1], sizes = [8, 1], strides = [1, 1]} : vector<8x2xf32> to vector<8x1xf32>
    %10 = vector.broadcast %9 : vector<8x1xf32> to vector<8x8xf32>
    %11 = vector.broadcast %2 : vector<1x8xf32> to vector<8x8xf32>
    %12 = arith.mulf %10, %11 : vector<8x8xf32>
    %13 = math.sin %12 : vector<8x8xf32>
    %14 = math.cos %12 : vector<8x8xf32>
    %15 = tpu.concatenate %7, %8, %13, %14 in 1 : vector<8x8xf32>, vector<8x8xf32>, vector<8x8xf32>, vector<8x8xf32> -> vector<8x32xf32>
    %c0_4 = arith.constant 0 : index
    %c0_5 = arith.constant 0 : index
    %c0_6 = arith.constant 0 : index
    %16 = vector.load %arg4[%c0_4, %c0_5, %c0_6] : memref<1x8x32xf32, #tpu.memory_space<vmem>>, vector<1x8x32xf32>
    %17 = vector.shape_cast %16 : vector<1x8x32xf32> to vector<8x32xf32>
    %18 = vector.shape_cast %15 : vector<8x32xf32> to vector<1x8x32xf32>
    tpu.vector_store %arg4[%c0_4, %c0_5, %c0_6], %18 {strides = array<i32>} : memref<1x8x32xf32, #tpu.memory_space<vmem>>, vector<1x8x32xf32>,
    return
  }
  func.func @transform_0(%arg0: i32, %arg1: i32) -> (i32, i32, i32) {
    %c0_i32 = arith.constant 0 : i32
    %c0_i32_0 = arith.constant 0 : i32
    return %arg0, %arg1, %c0_i32 : i32, i32, i32
  }
  func.func @transform_1(%arg0: i32, %arg1: i32) -> (i32, i32) {
    %c0_i32 = arith.constant 0 : i32
    %c0_i32_0 = arith.constant 0 : i32
    %c0_i32_1 = arith.constant 0 : i32
    return %c0_i32, %c0_i32_0 : i32, i32
  }
  func.func @transform_2(%arg0: i32, %arg1: i32) -> (i32, i32, i32) {
    %c0_i32 = arith.constant 0 : i32
    %c0_i32_0 = arith.constant 0 : i32
    return %arg0, %arg1, %c0_i32 : i32, i32, i32
  }
}

</mosaic_0001>

<llo_original>
// kernel: tpu_custom_call.1
$region0: #{tpu_custom_call.1}
  #allocation0 [shape = 'u32[]', space=smem, size = 0x4, offset = 0x4, fixed_abs, tag = 'smem constant byte address 0x4 - core index']
  #allocation1 [shape = 'u32[144,128]{1,0:T(1,128)}', space=vmem, size = 0x12000, scoped, tag = 'internal scratch']
  %s0 = inlined_call_operand.vmem [shape: f32[2,8,2], index: 0, kind: input, shape index: {}]
  %s1 = inlined_call_operand.vmem [shape: f32[1,8], index: 1, kind: input, shape index: {}]
  %s2 = inlined_call_operand.hbm [shape: f32[2,8,32], index: 2, kind: output, shape index: {}]
  %s3 = sld [smem:[#allocation0]]
  $region41: #{tpu_custom_call.1} parent=0
    _
  %s5 = ssub.s32 1, %s3
  %s6 = scalar_select 0, %s5, %s3
  $region1: #{tpu_custom_call.1} parent=0
    #allocation2 [shape = 'u8[8192]{0}', space=vmem, size = 0x2000, scoped, tag = 'output window, operand 0']
    #allocation3 [shape = 's32[2]{0}', space=sflag, size = 0x8, scoped, tag = 'scoped memory for tpu_custom_call.1']
    %7 = vsyncpa [#allocation3], 0
    %s8 = scalar_lea.sflag [#allocation3], 1
    %9 = vsyncpa %s8, 0
    loop: start=0, step=1, limit=4
    $region2: #{tpu_custom_call.1} parent=1 // loop_pre_header
      _
    $region3: #{tpu_custom_call.1} parent=1 // loop_header
      %s11 = sphi 0, %s15
      %p12 = scmp.ge.s32.totalorder %s11, 4
      %s18 = sphi 0, %s30
      %s19 = sphi 0, %s26
      %s20 = sphi 0, %s18
      %s21 = sphi 0, %s19
      %s22 = sphi 0, %s20
      %s23 = sphi 0, %s21
      %s35 = sphi 0, %s37
      %s38 = sphi 0, %s35
      %s39 = sphi 0, %s38
      %s55 = sphi 0, %s39
      %s59 = sphi 0, %s59
      %s61 = sphi 0, %s59
      %s62 = sphi 0, %s61
      %s76 = sphi 0, %s62
      %s84 = sphi 0, %s86
      %s87 = sphi 0, %s84
      %s88 = sphi 0, %s87
      %s104 = sphi 0, %s88
    $region4: #{tpu_custom_call.1} parent=1 // loop_header_branch
      %14 = sbr.rel (%p12) target = $region8
    $region5: #{tpu_custom_call.1} parent=1 // loop_body
      %s16 = ssub.s32 %s11, 1
      %s17 = ssub.s32 %s11, 2
      %s24 = sadd.s32 1, %s19
      %p25 = scmp.ge.s32.totalorder %s24, 1
      %s26 = scalar_select %p25, 0, %s24
      %s27 = sadd.s32 1, %s18
      %s28 = scalar_select %p25, %s27, %s18
      %p29 = scmp.ge.s32.totalorder %s28, 2
      %s30 = scalar_select %p29, 0, %s28
      %s31 = ssub.s32 %s18, %s30
      %s32 = ssub.s32 %s19, %s26
      %s33 = sor.u32 %s31, %s32
      %p34 = scmp.eq.s32.totalorder %s33, 0
      %s36 = sadd.s32 %s35, 1
      %s37 = scalar_select %p34, %s35, %s36
      %p40 = pneg %p34
      %p41 = scmp.eq.s32.totalorder %s11, 1
      %p42 = por %p40, %p41
      %p43 = scmp.ne.s32.totalorder %s35, %s38
      %p44 = scmp.eq.s32.totalorder %s11, 0
      %p45 = por %p43, %p44
      %p46 = scmp.ne.s32.totalorder %s35, %s38
      %p47 = scmp.eq.s32.totalorder %s16, 1
      %p48 = por %p46, %p47
      %p49 = scmp.ne.s32.totalorder %s38, %s39
      %p50 = scmp.eq.s32.totalorder %s16, 0
      %p51 = por %p49, %p50
      %p52 = scmp.ne.s32.totalorder %s38, %s39
      %p53 = scmp.eq.s32.totalorder %s17, 1
      %p54 = por %p52, %p53
      %p56 = scmp.ne.s32.totalorder %s39, %s55
      %p57 = scmp.eq.s32.totalorder %s17, 0
      %p58 = por %p56, %p57
      %s60 = sadd.s32 %s59, 1
      %p63 = scmp.eq.s32.totalorder %s11, 1
      %p64 = scmp.ne.s32.totalorder %s59, %s61
      %p65 = scmp.eq.s32.totalorder %s11, 0
      %p66 = por %p64, %p65
      %p67 = scmp.ne.s32.totalorder %s59, %s61
      %p68 = scmp.eq.s32.totalorder %s16, 1
      %p69 = por %p67, %p68
      %p70 = scmp.ne.s32.totalorder %s61, %s62
      %p71 = scmp.eq.s32.totalorder %s16, 0
      %p72 = por %p70, %p71
      %p73 = scmp.ne.s32.totalorder %s61, %s62
      %p74 = scmp.eq.s32.totalorder %s17, 1
      %p75 = por %p73, %p74
      %p77 = scmp.ne.s32.totalorder %s62, %s76
      %p78 = scmp.eq.s32.totalorder %s17, 0
      %p79 = por %p77, %p78
      %s80 = ssub.s32 %s18, %s30
      %s81 = ssub.s32 %s19, %s26
      %s82 = sor.u32 %s80, %s81
      %p83 = scmp.eq.s32.totalorder %s82, 0
      %s85 = sadd.s32 %s84, 1
      %s86 = scalar_select %p83, %s84, %s85
      %p89 = pneg %p83
      %p90 = scmp.eq.s32.totalorder %s11, 1
      %p91 = por %p89, %p90
      %p92 = scmp.ne.s32.totalorder %s84, %s87
      %p93 = scmp.eq.s32.totalorder %s11, 0
      %p94 = por %p92, %p93
      %p95 = scmp.ne.s32.totalorder %s84, %s87
      %p96 = scmp.eq.s32.totalorder %s16, 1
      %p97 = por %p95, %p96
      %p98 = scmp.ne.s32.totalorder %s87, %s88
      %p99 = scmp.eq.s32.totalorder %s16, 0
      %p100 = por %p98, %p99
      %p101 = scmp.ne.s32.totalorder %s87, %s88
      %p102 = scmp.eq.s32.totalorder %s17, 1
      %p103 = por %p101, %p102
      %p105 = scmp.ne.s32.totalorder %s88, %s104
      %p106 = scmp.eq.s32.totalorder %s17, 0
      %p107 = por %p105, %p106
      %p108 = scmp.le.s32.totalorder 1, %s11
      %p109 = scmp.lt.s32.totalorder %s11, 3
      %p110 = pnand %p108, %p109
      %p111 = pneg %p110
      // Predicated region
      $region9: #{tpu_custom_call.1} parent=5 // pred_check
        _
      $region10: #{tpu_custom_call.1} parent=5 // pred_check_branch
        %113 = sbr.rel (%p110) target = $region12
      $region11: #{tpu_custom_call.1} parent=5 // pred_region
        %s114 = ssub.s32 %s11, 1
        // Predicated region
        $region13: #{tpu_custom_call.1} parent=11 // pred_check
          %p115 = pneg %p72
        $region14: #{tpu_custom_call.1} parent=11 // pred_check_branch
          %117 = sbr.rel (%p115) target = $region16
        $region15: #{tpu_custom_call.1} parent=11 // pred_region
          _
        $region16: #{tpu_custom_call.1} parent=11 // pred_fallthru
          _
      $region12: #{tpu_custom_call.1} parent=5 // pred_fallthru
        _
      %p118 = scmp.lt.s32.totalorder %s11, 2
      // Predicated region
      $region17: #{tpu_custom_call.1} parent=5 // pred_check
        %p119 = pneg %p118
      $region18: #{tpu_custom_call.1} parent=5 // pred_check_branch
        %121 = sbr.rel (%p119) target = $region20
      $region19: #{tpu_custom_call.1} parent=5 // pred_region
        // Predicated region
        $region21: #{tpu_custom_call.1} parent=19 // pred_check
          %p122 = pneg %p45
        $region22: #{tpu_custom_call.1} parent=19 // pred_check_branch
          %124 = sbr.rel (%p122) target = $region24
        $region23: #{tpu_custom_call.1} parent=19 // pred_region
          %p125 = scmp.lt.s32.totalorder %s18, 1
          %s126 = scalar_select %p125, %s18, 1
          %p127 = scmp.lt.s32.totalorder %s19, 0
          %s128 = scalar_select %p127, %s19, 0
          %s129 = sadd.s32 %s128, %s126
          %s130 = smul.addr %s129, 8
          %s131 = scalar_lea.vmem %s0, %s130
        $region24: #{tpu_custom_call.1} parent=19 // pred_fallthru
          _
      $region20: #{tpu_custom_call.1} parent=5 // pred_fallthru
        _
      %p132 = scmp.le.s32.totalorder 1, %s11
      %p133 = scmp.lt.s32.totalorder %s11, 3
      %p134 = pnand %p132, %p133
      %p135 = pneg %p134
      // Predicated region
      $region25: #{tpu_custom_call.1} parent=5 // pred_check
        _
      $region26: #{tpu_custom_call.1} parent=5 // pred_check_branch
        %137 = sbr.rel (%p134) target = $region28
      $region27: #{tpu_custom_call.1} parent=5 // pred_region
        %s138 = ssub.s32 %s11, 1
        %p139 = scmp.lt.s32.totalorder %s20, 1
        %s140 = scalar_select %p139, %s20, 1
        %p141 = scmp.lt.s32.totalorder %s21, 0
        %s142 = scalar_select %p141, %s21, 0
        %s143 = sadd.s32 %s142, %s140
        %s144 = smul.addr %s143, 8
        %s145 = scalar_lea.vmem %s0, %s144
        %p146 = pneg %p51
        %p147 = pneg %p48
        %p148 = pneg %p72
        %p149 = pneg %p69
        %p150 = pneg %p100
        %p151 = pneg %p97
        %s152 = sand.u32 %s87, 1
        %s153 = scalar_lea.sflag [#allocation3], %s152
        %s154 = sand.u32 %s87, 1
        %s155 = smul.addr %s154, 8
        %s156 = scalar_lea.vmem [#allocation2], %s155
        %p157 = scmp.lt.s32.totalorder %s20, 1
        %s158 = scalar_select %p157, %s20, 1
        %p159 = scmp.lt.s32.totalorder %s21, 0
        %s160 = scalar_select %p159, %s21, 0
        %s161 = sadd.s32 %s160, %s158
        %s162 = smul.addr %s161, 8
        %s163 = scalar_lea.vmem %s0, %s162
        %v164 = vld [vmem:[%s163] sm:$0xff]
        %v165 = vld [vmem:[%s1] sm:$0x1]
        %167 = vset.pattern.permute.xlu0 0
        %168 = vperm.xlu0 %167, %v164
        %v169 = vpop.permute.xlu0 %168
        %v172 = vlaneseq
        %v173 = vshrl.u32 %v172, 7
        %v174 = vsub.s32 0, %v173
        %v175 = vrot.slane %v165, %v174
        %v177 = vmul.f32 %v169, %v175
        %v178 = vand.u32 2147483647, %v177
        %vm179 = vcmp.le.f32.partialorder %v178, 0.7853982
        %vm180 = vcmp.lt.s32.totalorder %v177, 0
        %v181 = vand.u32 %v177, 2139095040
        %v182 = vshrl.u32 %v181, 23
        %v183 = vsub.s32 %v182, 127
        %v184 = vand.u32 2147483647, %v177
        %v185 = vand.u32 %v184, 8388607
        %v186 = vor.u32 %v185, 8388608
        %v187 = vsub.s32 0, %v186
        %v188 = vadd.s32 %v183, 1
        %vm189 = vcmp.gt.s32.totalorder %v188, 0
        %v190 = vsel %vm189, %v188, 0
        %v191 = vshrl.u32 %v190, 5
        %v192 = vand.u32 %v190, 31
        %v193 = vsub.s32 32, %v192
        %v194 = vshrl.u32 683565275, %v193
        %v195 = vshll.u32 683565275, %v192
        %v196 = vshrl.u32 2475754826, %v193
        %v197 = vor.u32 %v195, %v196
        %v198 = vshll.u32 2475754826, %v192
        %v199 = vshrl.u32 2131351028, %v193
        %v200 = vor.u32 %v198, %v199
        %v201 = vshll.u32 2131351028, %v192
        %v202 = vshrl.u32 2102212464, %v193
        %v203 = vor.u32 %v201, %v202
        %v204 = vshll.u32 2102212464, %v192
        %v205 = vshrl.u32 920167782, %v193
        %v206 = vor.u32 %v204, %v205
        %v207 = vshll.u32 920167782, %v192
        %v208 = vshrl.u32 1326507024, %v193
        %v209 = vor.u32 %v207, %v208
        %vm210 = vcmp.lt.s32.totalorder %v191, 1
        %vm211 = vcmp.lt.s32.totalorder %v191, 2
        %vm212 = vcmp.lt.s32.totalorder %v191, 3
        %vm213 = vcmp.lt.s32.totalorder %v191, 4
        %v214 = vsel %vm210, %v194, %v197
        %v215 = vsel %vm213, %v203, 2102212464
        %v216 = vsel %vm212, %v200, %v215
        %v217 = vsel %vm211, %v214, %v216
        %v218 = vsel %vm210, %v197, %v200
        %v219 = vsel %vm213, %v206, 920167782
        %v220 = vsel %vm212, %v203, %v219
        %v221 = vsel %vm211, %v218, %v220
        %v222 = vsel %vm210, %v200, %v203
        %v223 = vsel %vm213, %v209, 1326507024
        %v224 = vsel %vm212, %v206, %v223
        %v225 = vsel %vm211, %v222, %v224
        %v226 = vshll.u32 %v186, 8
        %v227 = vmul.u32.u64.compose %v226, %v225
        %v228 = vextract.low.u32 %v227
        %v229 = vextract.high.u32 %v227
        %v230 = vmul.u32.u64.compose %v226, %v221
        %v231 = vextract.low.u32 %v230
        %v232 = vextract.high.u32 %v230
        %v233 = vmul.u32 %v226, %v217
        %v234 = vadd.s32 %v229, %v231
        %vm235 = vc.u32 %v229, %v231
        %v236 = vadd.s32 %v232, 1
        %v237 = vsel %vm235, %v236, %v232
        %v238 = vadd.s32 %v233, %v237
        %v239 = vadd.s32 %v238, 536870912
        %v240 = vshrl.u32 %v239, 30
        %v241 = vshll.u32 %v240, 30
        %v242 = vsub.s32 %v238, %v241
        %vm243 = vcmp.lt.s32.totalorder %v242, 0
        %v244 = vsub.s32 0, %v242
        %v245 = vsel %vm243, %v244, %v242
        %v246 = vclz %v245
        %v247 = vsub.s32 %v246, 2
        %vm248 = vcmp.gt.s32.totalorder 0, %v247
        %v249 = vsel %vm248, 0, %v247
        %v250 = vsub.s32 32, %v249
        %v251 = vshll.u32 %v242, %v249
        %v252 = vshrl.u32 %v234, %v250
        %v253 = vor.u32 %v251, %v252
        %v254 = vsub.s32 4294967266, %v249
        %v255 = vadd.s32 %v254, 127
        %v256 = vshll.u32 %v255, 23
        %v257 = vor.u32 4788187, %v256
        %v258 = vand.u32 2147483647, %v257
        %v260 = vcvt.s32.f32 %v253
        %v261 = vmul.f32 %v260, %v258
        %v262 = vxor.u32 %v261, 2147483648
        %v263 = vsel %vm180, %v262, %v261
        %v264 = vsub.s32 4, %v240
        %v265 = vsel %vm180, %v264, %v240
        %v266 = vsel %vm179, %v177, %v263
        %v267 = vsel %vm179, 0, %v265
        %v268 = vcosq.f32.pop %v266
        %v269 = vsinq.f32.pop %v266
        %vm270 = vweird.f32 %v177
        %v271 = vadd.s32 %v267, 3
        %v272 = vand.u32 %v271, 3
        %vm273 = vcmp.lt.s32.totalorder %v272, 2
        %vm274 = vcmp.eq.s32.totalorder %v272, 0
        %v275 = vxor.u32 %v269, 2147483648
        %v276 = vsel %vm274, %v268, %v275
        %vm277 = vcmp.eq.s32.totalorder %v272, 2
        %v278 = vxor.u32 %v268, 2147483648
        %v279 = vsel %vm277, %v278, %v269
        %v280 = vsel %vm273, %v276, %v279
        %v281 = vsel %vm270, nan, %v280
        %v282 = vand.u32 2147483647, %v177
        %vm283 = vcmp.le.f32.partialorder %v282, 0.7853982
        %vm284 = vcmp.lt.s32.totalorder %v177, 0
        %v285 = vand.u32 %v177, 2139095040
        %v286 = vshrl.u32 %v285, 23
        %v287 = vsub.s32 %v286, 127
        %v288 = vand.u32 2147483647, %v177
        %v289 = vand.u32 %v288, 8388607
        %v290 = vor.u32 %v289, 8388608
        %v291 = vsub.s32 0, %v290
        %v292 = vadd.s32 %v287, 1
        %vm293 = vcmp.gt.s32.totalorder %v292, 0
        %v294 = vsel %vm293, %v292, 0
        %v295 = vshrl.u32 %v294, 5
        %v296 = vand.u32 %v294, 31
        %v297 = vsub.s32 32, %v296
        %v298 = vshrl.u32 683565275, %v297
        %v299 = vshll.u32 683565275, %v296
        %v300 = vshrl.u32 2475754826, %v297
        %v301 = vor.u32 %v299, %v300
        %v302 = vshll.u32 2475754826, %v296
        %v303 = vshrl.u32 2131351028, %v297
        %v304 = vor.u32 %v302, %v303
        %v305 = vshll.u32 2131351028, %v296
        %v306 = vshrl.u32 2102212464, %v297
        %v307 = vor.u32 %v305, %v306
        %v308 = vshll.u32 2102212464, %v296
        %v309 = vshrl.u32 920167782, %v297
        %v310 = vor.u32 %v308, %v309
        %v311 = vshll.u32 920167782, %v296
        %v312 = vshrl.u32 1326507024, %v297
        %v313 = vor.u32 %v311, %v312
        %vm314 = vcmp.lt.s32.totalorder %v295, 1
        %vm315 = vcmp.lt.s32.totalorder %v295, 2
        %vm316 = vcmp.lt.s32.totalorder %v295, 3
        %vm317 = vcmp.lt.s32.totalorder %v295, 4
        %v318 = vsel %vm314, %v298, %v301
        %v319 = vsel %vm317, %v307, 2102212464
        %v320 = vsel %vm316, %v304, %v319
        %v321 = vsel %vm315, %v318, %v320
        %v322 = vsel %vm314, %v301, %v304
        %v323 = vsel %vm317, %v310, 920167782
        %v324 = vsel %vm316, %v307, %v323
        %v325 = vsel %vm315, %v322, %v324
        %v326 = vsel %vm314, %v304, %v307
        %v327 = vsel %vm317, %v313, 1326507024
        %v328 = vsel %vm316, %v310, %v327
        %v329 = vsel %vm315, %v326, %v328
        %v330 = vshll.u32 %v290, 8
        %v331 = vmul.u32.u64.compose %v330, %v329
        %v332 = vextract.low.u32 %v331
        %v333 = vextract.high.u32 %v331
        %v334 = vmul.u32.u64.compose %v330, %v325
        %v335 = vextract.low.u32 %v334
        %v336 = vextract.high.u32 %v334
        %v337 = vmul.u32 %v330, %v321
        %v338 = vadd.s32 %v333, %v335
        %vm339 = vc.u32 %v333, %v335
        %v340 = vadd.s32 %v336, 1
        %v341 = vsel %vm339, %v340, %v336
        %v342 = vadd.s32 %v337, %v341
        %v343 = vadd.s32 %v342, 536870912
        %v344 = vshrl.u32 %v343, 30
        %v345 = vshll.u32 %v344, 30
        %v346 = vsub.s32 %v342, %v345
        %vm347 = vcmp.lt.s32.totalorder %v346, 0
        %v348 = vsub.s32 0, %v346
        %v349 = vsel %vm347, %v348, %v346
        %v350 = vclz %v349
        %v351 = vsub.s32 %v350, 2
        %vm352 = vcmp.gt.s32.totalorder 0, %v351
        %v353 = vsel %vm352, 0, %v351
        %v354 = vsub.s32 32, %v353
        %v355 = vshll.u32 %v346, %v353
        %v356 = vshrl.u32 %v338, %v354
        %v357 = vor.u32 %v355, %v356
        %v358 = vsub.s32 4294967266, %v353
        %v359 = vadd.s32 %v358, 127
        %v360 = vshll.u32 %v359, 23
        %v361 = vor.u32 4788187, %v360
        %v362 = vand.u32 2147483647, %v361
        %v364 = vcvt.s32.f32 %v357
        %v365 = vmul.f32 %v364, %v362
        %v366 = vxor.u32 %v365, 2147483648
        %v367 = vsel %vm284, %v366, %v365
        %v368 = vsub.s32 4, %v344
        %v369 = vsel %vm284, %v368, %v344
        %v370 = vsel %vm283, %v177, %v367
        %v371 = vsel %vm283, 0, %v369
        %v372 = vcosq.f32.pop %v370
        %v373 = vsinq.f32.pop %v370
        %vm374 = vweird.f32 %v177
        %v375 = vand.u32 %v371, 3
        %vm376 = vcmp.lt.s32.totalorder %v375, 2
        %vm377 = vcmp.eq.s32.totalorder %v375, 0
        %v378 = vxor.u32 %v373, 2147483648
        %v379 = vsel %vm377, %v372, %v378
        %vm380 = vcmp.eq.s32.totalorder %v375, 2
        %v381 = vxor.u32 %v372, 2147483648
        %v382 = vsel %vm380, %v381, %v373
        %v383 = vsel %vm376, %v379, %v382
        %v384 = vsel %vm374, nan, %v383
        %385 = vset.pattern.permute.xlu0 1
        %386 = vperm.xlu0 %385, %v164
        %v387 = vpop.permute.xlu0 %386
        %v389 = vmul.f32 %v387, %v175
        %v390 = vand.u32 2147483647, %v389
        %vm391 = vcmp.le.f32.partialorder %v390, 0.7853982
        %vm392 = vcmp.lt.s32.totalorder %v389, 0
        %v393 = vand.u32 %v389, 2139095040
        %v394 = vshrl.u32 %v393, 23
        %v395 = vsub.s32 %v394, 127
        %v396 = vand.u32 2147483647, %v389
        %v397 = vand.u32 %v396, 8388607
        %v398 = vor.u32 %v397, 8388608
        %v399 = vsub.s32 0, %v398
        %v400 = vadd.s32 %v395, 1
        %vm401 = vcmp.gt.s32.totalorder %v400, 0
        %v402 = vsel %vm401, %v400, 0
        %v403 = vshrl.u32 %v402, 5
        %v404 = vand.u32 %v402, 31
        %v405 = vsub.s32 32, %v404
        %v406 = vshrl.u32 683565275, %v405
        %v407 = vshll.u32 683565275, %v404
        %v408 = vshrl.u32 2475754826, %v405
        %v409 = vor.u32 %v407, %v408
        %v410 = vshll.u32 2475754826, %v404
        %v411 = vshrl.u32 2131351028, %v405
        %v412 = vor.u32 %v410, %v411
        %v413 = vshll.u32 2131351028, %v404
        %v414 = vshrl.u32 2102212464, %v405
        %v415 = vor.u32 %v413, %v414
        %v416 = vshll.u32 2102212464, %v404
        %v417 = vshrl.u32 920167782, %v405
        %v418 = vor.u32 %v416, %v417
        %v419 = vshll.u32 920167782, %v404
        %v420 = vshrl.u32 1326507024, %v405
        %v421 = vor.u32 %v419, %v420
        %vm422 = vcmp.lt.s32.totalorder %v403, 1
        %vm423 = vcmp.lt.s32.totalorder %v403, 2
        %vm424 = vcmp.lt.s32.totalorder %v403, 3
        %vm425 = vcmp.lt.s32.totalorder %v403, 4
        %v426 = vsel %vm422, %v406, %v409
        %v427 = vsel %vm425, %v415, 2102212464
        %v428 = vsel %vm424, %v412, %v427
        %v429 = vsel %vm423, %v426, %v428
        %v430 = vsel %vm422, %v409, %v412
        %v431 = vsel %vm425, %v418, 920167782
        %v432 = vsel %vm424, %v415, %v431
        %v433 = vsel %vm423, %v430, %v432
        %v434 = vsel %vm422, %v412, %v415
        %v435 = vsel %vm425, %v421, 1326507024
        %v436 = vsel %vm424, %v418, %v435
        %v437 = vsel %vm423, %v434, %v436
        %v438 = vshll.u32 %v398, 8
        %v439 = vmul.u32.u64.compose %v438, %v437
        %v440 = vextract.low.u32 %v439
        %v441 = vextract.high.u32 %v439
        %v442 = vmul.u32.u64.compose %v438, %v433
        %v443 = vextract.low.u32 %v442
        %v444 = vextract.high.u32 %v442
        %v445 = vmul.u32 %v438, %v429
        %v446 = vadd.s32 %v441, %v443
        %vm447 = vc.u32 %v441, %v443
        %v448 = vadd.s32 %v444, 1
        %v449 = vsel %vm447, %v448, %v444
        %v450 = vadd.s32 %v445, %v449
        %v451 = vadd.s32 %v450, 536870912
        %v452 = vshrl.u32 %v451, 30
        %v453 = vshll.u32 %v452, 30
        %v454 = vsub.s32 %v450, %v453
        %vm455 = vcmp.lt.s32.totalorder %v454, 0
        %v456 = vsub.s32 0, %v454
        %v457 = vsel %vm455, %v456, %v454
        %v458 = vclz %v457
        %v459 = vsub.s32 %v458, 2
        %vm460 = vcmp.gt.s32.totalorder 0, %v459
        %v461 = vsel %vm460, 0, %v459
        %v462 = vsub.s32 32, %v461
        %v463 = vshll.u32 %v454, %v461
        %v464 = vshrl.u32 %v446, %v462
        %v465 = vor.u32 %v463, %v464
        %v466 = vsub.s32 4294967266, %v461
        %v467 = vadd.s32 %v466, 127
        %v468 = vshll.u32 %v467, 23
        %v469 = vor.u32 4788187, %v468
        %v470 = vand.u32 2147483647, %v469
        %v472 = vcvt.s32.f32 %v465
        %v473 = vmul.f32 %v472, %v470
        %v474 = vxor.u32 %v473, 2147483648
        %v475 = vsel %vm392, %v474, %v473
        %v476 = vsub.s32 4, %v452
        %v477 = vsel %vm392, %v476, %v452
        %v478 = vsel %vm391, %v389, %v475
        %v479 = vsel %vm391, 0, %v477
        %v480 = vcosq.f32.pop %v478
        %v481 = vsinq.f32.pop %v478
        %vm482 = vweird.f32 %v389
        %v483 = vadd.s32 %v479, 3
        %v484 = vand.u32 %v483, 3
        %vm485 = vcmp.lt.s32.totalorder %v484, 2
        %vm486 = vcmp.eq.s32.totalorder %v484, 0
        %v487 = vxor.u32 %v481, 2147483648
        %v488 = vsel %vm486, %v480, %v487
        %vm489 = vcmp.eq.s32.totalorder %v484, 2
        %v490 = vxor.u32 %v480, 2147483648
        %v491 = vsel %vm489, %v490, %v481
        %v492 = vsel %vm485, %v488, %v491
        %v493 = vsel %vm482, nan, %v492
        %v494 = vand.u32 2147483647, %v389
        %vm495 = vcmp.le.f32.partialorder %v494, 0.7853982
        %vm496 = vcmp.lt.s32.totalorder %v389, 0
        %v497 = vand.u32 %v389, 2139095040
        %v498 = vshrl.u32 %v497, 23
        %v499 = vsub.s32 %v498, 127
        %v500 = vand.u32 2147483647, %v389
        %v501 = vand.u32 %v500, 8388607
        %v502 = vor.u32 %v501, 8388608
        %v503 = vsub.s32 0, %v502
        %v504 = vadd.s32 %v499, 1
        %vm505 = vcmp.gt.s32.totalorder %v504, 0
        %v506 = vsel %vm505, %v504, 0
        %v507 = vshrl.u32 %v506, 5
        %v508 = vand.u32 %v506, 31
        %v509 = vsub.s32 32, %v508
        %v510 = vshrl.u32 683565275, %v509
        %v511 = vshll.u32 683565275, %v508
        %v512 = vshrl.u32 2475754826, %v509
        %v513 = vor.u32 %v511, %v512
        %v514 = vshll.u32 2475754826, %v508
        %v515 = vshrl.u32 2131351028, %v509
        %v516 = vor.u32 %v514, %v515
        %v517 = vshll.u32 2131351028, %v508
        %v518 = vshrl.u32 2102212464, %v509
        %v519 = vor.u32 %v517, %v518
        %v520 = vshll.u32 2102212464, %v508
        %v521 = vshrl.u32 920167782, %v509
        %v522 = vor.u32 %v520, %v521
        %v523 = vshll.u32 920167782, %v508
        %v524 = vshrl.u32 1326507024, %v509
        %v525 = vor.u32 %v523, %v524
        %vm526 = vcmp.lt.s32.totalorder %v507, 1
        %vm527 = vcmp.lt.s32.totalorder %v507, 2
        %vm528 = vcmp.lt.s32.totalorder %v507, 3
        %vm529 = vcmp.lt.s32.totalorder %v507, 4
        %v530 = vsel %vm526, %v510, %v513
        %v531 = vsel %vm529, %v519, 2102212464
        %v532 = vsel %vm528, %v516, %v531
        %v533 = vsel %vm527, %v530, %v532
        %v534 = vsel %vm526, %v513, %v516
        %v535 = vsel %vm529, %v522, 920167782
        %v536 = vsel %vm528, %v519, %v535
        %v537 = vsel %vm527, %v534, %v536
        %v538 = vsel %vm526, %v516, %v519
        %v539 = vsel %vm529, %v525, 1326507024
        %v540 = vsel %vm528, %v522, %v539
        %v541 = vsel %vm527, %v538, %v540
        %v542 = vshll.u32 %v502, 8
        %v543 = vmul.u32.u64.compose %v542, %v541
        %v544 = vextract.low.u32 %v543
        %v545 = vextract.high.u32 %v543
        %v546 = vmul.u32.u64.compose %v542, %v537
        %v547 = vextract.low.u32 %v546
        %v548 = vextract.high.u32 %v546
        %v549 = vmul.u32 %v542, %v533
        %v550 = vadd.s32 %v545, %v547
        %vm551 = vc.u32 %v545, %v547
        %v552 = vadd.s32 %v548, 1
        %v553 = vsel %vm551, %v552, %v548
        %v554 = vadd.s32 %v549, %v553
        %v555 = vadd.s32 %v554, 536870912
        %v556 = vshrl.u32 %v555, 30
        %v557 = vshll.u32 %v556, 30
        %v558 = vsub.s32 %v554, %v557
        %vm559 = vcmp.lt.s32.totalorder %v558, 0
        %v560 = vsub.s32 0, %v558
        %v561 = vsel %vm559, %v560, %v558
        %v562 = vclz %v561
        %v563 = vsub.s32 %v562, 2
        %vm564 = vcmp.gt.s32.totalorder 0, %v563
        %v565 = vsel %vm564, 0, %v563
        %v566 = vsub.s32 32, %v565
        %v567 = vshll.u32 %v558, %v565
        %v568 = vshrl.u32 %v550, %v566
        %v569 = vor.u32 %v567, %v568
        %v570 = vsub.s32 4294967266, %v565
        %v571 = vadd.s32 %v570, 127
        %v572 = vshll.u32 %v571, 23
        %v573 = vor.u32 4788187, %v572
        %v574 = vand.u32 2147483647, %v573
        %v576 = vcvt.s32.f32 %v569
        %v577 = vmul.f32 %v576, %v574
        %v578 = vxor.u32 %v577, 2147483648
        %v579 = vsel %vm496, %v578, %v577
        %v580 = vsub.s32 4, %v556
        %v581 = vsel %vm496, %v580, %v556
        %v582 = vsel %vm495, %v389, %v579
        %v583 = vsel %vm495, 0, %v581
        %v584 = vcosq.f32.pop %v582
        %v585 = vsinq.f32.pop %v582
        %vm586 = vweird.f32 %v389
        %v587 = vand.u32 %v583, 3
        %vm588 = vcmp.lt.s32.totalorder %v587, 2
        %vm589 = vcmp.eq.s32.totalorder %v587, 0
        %v590 = vxor.u32 %v585, 2147483648
        %v591 = vsel %vm589, %v584, %v590
        %vm592 = vcmp.eq.s32.totalorder %v587, 2
        %v593 = vxor.u32 %v584, 2147483648
        %v594 = vsel %vm592, %v593, %v585
        %v595 = vsel %vm588, %v591, %v594
        %v596 = vsel %vm586, nan, %v595
        %598 = vrot.lane.b32.xlu0 %v384, 8
        %v599 = vpop.permute.xlu0 %598
        %602 = vrot.lane.b32.xlu0 %v493, 16
        %v603 = vpop.permute.xlu0 %602
        %606 = vrot.lane.b32.xlu0 %v596, 24
        %v607 = vpop.permute.xlu0 %606
        %vm609 = vcmask 64512
        %v610 = vsel %vm609, %v281, %v599
        %vm611 = vcmask 130048
        %v612 = vsel %vm611, %v610, %v603
        %vm613 = vcmask 195584
        %v614 = vsel %vm613, %v612, %v607
        %vm615 = vcmask 261120
        %616 = vst.msk [vmem:[%s156] sm:$0xff] %vm615, %v614
        %s617 = sand.u32 %s87, 1
        %s618 = scalar_lea.sflag [#allocation3], %s617
        %s619 = sand.u32 %s87, 1
        %s620 = smul.addr %s619, 8
        %s621 = scalar_lea.vmem [#allocation2], %s620
        // Predicated region
        $region29: #{tpu_custom_call.1} parent=27 // pred_check
          %p622 = pneg %p97
        $region30: #{tpu_custom_call.1} parent=27 // pred_check_branch
          %624 = sbr.rel (%p622) target = $region32
        $region31: #{tpu_custom_call.1} parent=27 // pred_region
          %s626 = ssub.s32 128, 128
          %627 = vsyncadd %s618, %s626
          %s628 = sadd.s32 %s21, %s20
          %s629 = smul.addr %s628, 128
          %s630 = scalar_lea.hbm %s2, %s629
          %s632 = sshll.u32 %s621, 4
          %s633 = int_to_ptr.vmem [resolvable:$true] %s632
          %635 = dma.vmem_to_hbm [thread:$0]  %s633, 128, %s630, %s618
        $region32: #{tpu_custom_call.1} parent=27 // pred_fallthru
          _
      $region28: #{tpu_custom_call.1} parent=5 // pred_fallthru
        _
      %p636 = scmp.le.s32.totalorder 2, %s11
      // Predicated region
      $region33: #{tpu_custom_call.1} parent=5 // pred_check
        %p637 = pneg %p636
      $region34: #{tpu_custom_call.1} parent=5 // pred_check_branch
        %639 = sbr.rel (%p637) target = $region36
      $region35: #{tpu_custom_call.1} parent=5 // pred_region
        %s640 = ssub.s32 %s11, 2
        // Predicated region
        $region37: #{tpu_custom_call.1} parent=35 // pred_check
          %p641 = pneg %p103
        $region38: #{tpu_custom_call.1} parent=35 // pred_check_branch
          %643 = sbr.rel (%p641) target = $region40
        $region39: #{tpu_custom_call.1} parent=35 // pred_region
          %s644 = sand.u32 %s88, 1
          %s645 = scalar_lea.sflag [#allocation3], %s644
          %s646 = sand.u32 %s88, 1
          %s647 = smul.addr %s646, 8
          %s648 = scalar_lea.vmem [#allocation2], %s647
          %649 = dma.done %s645, 128
        $region40: #{tpu_custom_call.1} parent=35 // pred_fallthru
          _
      $region36: #{tpu_custom_call.1} parent=5 // pred_fallthru
        _
    $region6: #{tpu_custom_call.1} parent=1 // loop_footer
      %s15 = sadd.s32 1, %s11
    $region7: #{tpu_custom_call.1} parent=1 // loop_footer_branch
      %10 = sbr.rel target = $region3
    $region8: #{tpu_custom_call.1} parent=1 // loop_exit
      _
    %650 = vsyncpa [#allocation3], 1
    %s651 = scalar_lea.sflag [#allocation3], 1
    %652 = vsyncpa %s651, 1

</llo_original>
